<compile_context>
chip_gen: v7x
topology: tpu7x:2x2x1
jax: 0.10.0
libtpu: 0.0.40
codegen_flags: <defaults>
</compile_context>

<pallas_src>
import jax
import jax.numpy as jnp
from jax.experimental import pallas as pl
from jax.experimental.pallas import tpu as pltpu


_MASK_FILL = jnp.float32(-1e12)   # PyTorch masked_fill value (-1000000000000.0)
_PAD_FILL = jnp.float32(-1e30)    # pad-lane fill (exp underflows to exactly 0)


def _round_up(x, m):
    return ((x + m - 1) // m) * m


# --------------------------------------------------------------------------- #
# Kernel
# --------------------------------------------------------------------------- #
def _attn_kernel(hidden_ref, enc_ref, wht_ref, wet_ref, bias_ref, v_ref,
                 mbias_ref, out_ref):
    """One batch tile.

    hidden_ref: (TB, Hp)        compute dtype
    enc_ref:    (S, TB, Hp)     compute dtype (native (S,B,H) layout, batch tile)
    wht_ref:    (Hp, Hp)        compute dtype (attn.weight[:, :H]^T, zero-padded)
    wet_ref:    (Hp, Hp)        compute dtype (attn.weight[:, H:]^T, zero-padded)
    bias_ref:   (1, Hp)  f32
    v_ref:      (1, Hp)  f32    (score.weight row, zero-padded)
    mbias_ref:  (TB, S_pad) f32 (0 valid / -1e12 masked / -1e30 pad lane)
    out_ref:    (TB, S_pad) f32 lane-dense padded output block
    """
    S = enc_ref.shape[0]
    TB, S_pad = out_ref.shape
    Hp = enc_ref.shape[-1]

    hidden = hidden_ref[...]                                         # (TB, Hp)
    enc = enc_ref[...]                                               # (S, TB, Hp)

    # hidden @ W_h^T + b   (f32 accumulation on the MXU)
    hproj = jnp.dot(hidden, wht_ref[...],
                    preferred_element_type=jnp.float32) + bias_ref[...]   # (TB, Hp)

    # enc @ W_e^T as ONE flattened MXU matmul: (S*TB, Hp) x (Hp, Hp).
    # TB is always a multiple of 8 (batch padded in prepare_encoder), so the
    # reshape is a free leading-dim collapse and M = S*TB fills the MXU.
    eproj = jnp.dot(enc.reshape(S * TB, Hp), wet_ref[...],
                    preferred_element_type=jnp.float32).reshape(S, TB, Hp)

    t = jnp.tanh(eproj + hproj[None, :, :])                          # (S, TB, Hp) f32

    # score(.): VPU multiply + lane reduction (no N=1 MXU matmul).
    energies_sb = jnp.sum(t * v_ref[...][None, :, :], axis=-1)       # (S, TB)

    e = energies_sb.T                                                # (TB, S)
    if S_pad > S:
        e = jnp.concatenate(
            [e, jnp.zeros((TB, S_pad - S), jnp.float32)], axis=-1)   # (TB, S_pad)

    # Exact PyTorch masked_fill: masked logits become exactly -1e12; padded
    # lanes become -1e30 and contribute exactly 0 to the softmax denominator.
    mb = mbias_ref[...]
    e = jnp.where(mb < jnp.float32(-1.0), mb, e)

    m = jnp.max(e, axis=-1, keepdims=True)                           # (TB, 1)
    p = jnp.exp(e - m)                                               # (TB, S_pad)
    denom = jnp.sum(p, axis=-1, keepdims=True)                       # (TB, 1)
    # EUP approximate reciprocal + one Newton step (~f32 accurate, no divide).
    r = pl.reciprocal(denom, approx=True)
    r = r * (2.0 - denom * r)
    out_ref[...] = p * r          # single unmasked full-width (lane-dense) store


# --------------------------------------------------------------------------- #
# Per-generation VMEM sizing
# --------------------------------------------------------------------------- #
def _vmem_capacity_bytes():
    """Physical VMEM per TensorCore (v5e/v6e: 128 MiB, v7x: 64 MiB)."""
    try:
        cap = getattr(pltpu.get_tpu_info(), "vmem_capacity_bytes", None)
        if cap:
            return int(cap)
    except Exception:
        pass
    return 64 << 20    # conservative fallback (v7x per-core)


def _vmem_footprint(tb, seq, hid_p, s_pad, itemsize):
    """Rough per-grid-step VMEM footprint: double-buffered pipeline blocks
    (inputs, outputs, weights) plus the f32 (S, TB, Hp) intermediates."""
    enc_blk = seq * tb * hid_p * itemsize
    hid_blk = tb * hid_p * itemsize
    io_blk = 2 * tb * s_pad * 4                      # mask bias in + probs out
    weights = 2 * hid_p * hid_p * itemsize + 2 * hid_p * 4
    interm = 3 * seq * tb * hid_p * 4                # eproj / tanh / t*v (f32)
    return 2 * (enc_blk + hid_blk + io_blk + weights) + interm


def _pick_batch_tile(batch, seq, hid_p, s_pad, itemsize, budget):
    """Largest multiple-of-8 batch tile dividing `batch` that fits `budget` and
    keeps >= 2 grid steps whenever the batch allows (megacore sharding on v7x
    and DMA/compute overlap)."""
    if batch % 8 != 0:           # callers pad the batch; defensive fallback
        return batch
    max_tb = batch if batch < 16 else batch // 2
    cands = [tb for tb in range(8, max_tb + 1, 8) if batch % tb == 0]
    if not cands:
        cands = [8]
    best = cands[0]
    for tb in cands:
        if _vmem_footprint(tb, seq, hid_p, s_pad, itemsize) <= budget:
            best = max(best, tb)
    return best


# --------------------------------------------------------------------------- #
# Hoisted (once-per-model / once-per-sequence) preprocessing
# --------------------------------------------------------------------------- #
def prepare_attn_params(attn_weight, attn_bias, score_weight,
                        *, compute_dtype=jnp.bfloat16):
    """Once per model: split + transpose attn.weight, zero-pad H up to a
    multiple of 128 (lane dim) and cast matmul operands.  Zero padding is exact."""
    H = attn_weight.shape[0]
    Hp = _round_up(H, 128)
    cdt = jnp.dtype(compute_dtype)

    w_h_t = attn_weight[:, :H].T                      # (H, H)
    w_e_t = attn_weight[:, H:].T                      # (H, H)
    b = attn_bias.reshape(1, H)
    v = score_weight.reshape(1, H)
    if Hp > H:
        pad2 = ((0, Hp - H), (0, Hp - H))
        pad_r = ((0, 0), (0, Hp - H))
        w_h_t = jnp.pad(w_h_t, pad2)
        w_e_t = jnp.pad(w_e_t, pad2)
        b = jnp.pad(b, pad_r)
        v = jnp.pad(v, pad_r)
    return {
        "w_h_t": w_h_t.astype(cdt),
        "w_e_t": w_e_t.astype(cdt),
        "bias": b.astype(jnp.float32),
        "v": v.astype(jnp.float32),
        "hidden_size": H,
        "compute_dtype": cdt,
    }


def prepare_encoder(encoder_outputs, seq_mask=None, *, compute_dtype=jnp.bfloat16):
    """Once per sequence: cast/pad encoder_outputs (native (S, B, H) layout kept,
    no HBM transpose; batch padded to a multiple of 8, H to a multiple of 128)
    and build the (B_pad, S_pad) f32 mask bias (0 valid / -1e12 masked / -1e30
    pad lane)."""
    S, B, H = encoder_outputs.shape
    Hp = _round_up(H, 128)
    S_pad = _round_up(S, 128)
    B_pad = _round_up(B, 8)
    cdt = jnp.dtype(compute_dtype)

    enc = encoder_outputs
    if B_pad > B or Hp > H:
        enc = jnp.pad(enc, ((0, 0), (0, B_pad - B), (0, Hp - H)))
    enc = enc.astype(cdt)

    mb = jnp.zeros((B_pad, S_pad), jnp.float32)
    if S_pad > S:
        mb = mb.at[:, S:].set(_PAD_FILL)
    if seq_mask is not None:
        mb = mb.at[:B, :S].set(
            jnp.where(seq_mask.astype(bool), _MASK_FILL, jnp.float32(0.0)))
    return enc, mb


# --------------------------------------------------------------------------- #
# Per-decode-step call
# --------------------------------------------------------------------------- #
def attn_step(hidden, enc_prepared, mask_bias, params, *, batch_block=None):
    """One decoder step.  hidden: (1, B, H).  Returns (B, 1, S) attention weights."""
    S, B_pad, Hp = enc_prepared.shape
    B = hidden.shape[1]
    H = params["hidden_size"]
    cdt = params["compute_dtype"]
    S_pad = mask_bias.shape[1]

    # Only the tiny per-step hidden cast/pad happens here (B x H elements).
    hidden2d = hidden.reshape(B, H)
    if B_pad > B or Hp > H:
        hidden2d = jnp.pad(hidden2d, ((0, B_pad - B), (0, Hp - H)))
    hidden2d = hidden2d.astype(cdt)

    cap = _vmem_capacity_bytes()
    budget = int(0.45 * cap)
    if batch_block is not None:
        TB = batch_block
    else:
        TB = _pick_batch_tile(B_pad, S, Hp, S_pad, cdt.itemsize, budget)
    assert B_pad % TB == 0 and TB % 8 == 0
    grid = (B_pad // TB,)

    fp = _vmem_footprint(TB, S, Hp, S_pad, cdt.itemsize)
    vmem_limit = int(min(0.85 * cap, max(32 << 20, 1.3 * fp)))

    out = pl.pallas_call(
        _attn_kernel,
        out_shape=jax.ShapeDtypeStruct((B_pad, S_pad), jnp.float32),
        grid=grid,
        in_specs=[
            pl.BlockSpec((TB, Hp), lambda i: (i, 0)),          # hidden (batch tile)
            pl.BlockSpec((S, TB, Hp), lambda i: (0, i, 0)),    # enc, batch-sliced, full S
            pl.BlockSpec((Hp, Hp), lambda i: (0, 0)),          # W_h^T  (resident)
            pl.BlockSpec((Hp, Hp), lambda i: (0, 0)),          # W_e^T  (resident)
            pl.BlockSpec((1, Hp), lambda i: (0, 0)),           # bias   (resident)
            pl.BlockSpec((1, Hp), lambda i: (0, 0)),           # score row v
            pl.BlockSpec((TB, S_pad), lambda i: (i, 0)),       # mask bias
        ],
        out_specs=pl.BlockSpec((TB, S_pad), lambda i: (i, 0)),
        compiler_params=pltpu.CompilerParams(
            # Batch tiles are fully independent -> sharded across v7x's 2 TCs,
            # harmless no-op on single-TC v5e / v6e.
            dimension_semantics=("parallel",),
            vmem_limit_bytes=vmem_limit),
    )(hidden2d, enc_prepared, params["w_h_t"], params["w_e_t"],
      params["bias"], params["v"], mask_bias)

    return out[:B, None, :S]                                   # (B, 1, S)


def attn_forward(hidden, encoder_outputs, attn_weight, attn_bias, score_weight,
                 seq_mask=None, *, compute_dtype=jnp.bfloat16, batch_block=None):
    """One-shot convenience wrapper (prepare + step).  In a real decoder loop,
    call prepare_attn_params / prepare_encoder ONCE and attn_step per step so
    the (S, B, H) cast/pad and weight transposes are not redone every step."""
    params = prepare_attn_params(attn_weight, attn_bias, score_weight,
                                 compute_dtype=compute_dtype)
    enc_p, mask_bias = prepare_encoder(encoder_outputs, seq_mask,
                                       compute_dtype=compute_dtype)
    return attn_step(hidden, enc_p, mask_bias, params, batch_block=batch_block)


# --------------------------------------------------------------------------- #
# Pure-JAX reference (replica of the PyTorch forward)
# --------------------------------------------------------------------------- #
def attn_reference(hidden, encoder_outputs, attn_weight, attn_bias, score_weight,
                   seq_mask=None):
    S, B, H = encoder_outputs.shape
    hidden_rep = jnp.tile(hidden, (S, 1, 1))                       # (S, B, H)
    energy_in = jnp.concatenate([hidden_rep, encoder_outputs], 2)  # (S, B, 2H)
    energy_in = energy_in.reshape(-1, 2 * H)                       # (S*B, 2H)
    e = jnp.tanh(energy_in @ attn_weight.T + attn_bias)            # (S*B, H)
    e = (e @ score_weight.T)[:, 0]                                 # (S*B,)
    e = e.reshape(S, B).T                                          # (B, S)
    if seq_mask is not None:
        e = jnp.where(seq_mask, -1e12, e)
    e = jax.nn.softmax(e, axis=1)
    return e[:, None, :]


if __name__ == "__main__":
    B, S, H = 2, 8, 32

    key = jax.random.PRNGKey(0)
    k1, k2, k3, k4, k5 = jax.random.split(key, 5)

    hidden = jax.random.normal(k1, (1, B, H), dtype=jnp.float32)
    encoder_outputs = jax.random.normal(k2, (S, B, H), dtype=jnp.float32)

    # Deterministic parameter init (shapes from nn.Linear in __init__).
    attn_weight = jax.random.normal(k3, (H, 2 * H), dtype=jnp.float32) * 0.1   # attn.weight
    attn_bias = jax.random.normal(k4, (H,), dtype=jnp.float32) * 0.1           # attn.bias
    score_weight = jax.random.normal(k5, (1, H), dtype=jnp.float32) * 0.1      # score.weight

    # Mask out the last two timesteps of the second batch element.
    seq_mask = jnp.zeros((B, S), dtype=bool).at[1, -2:].set(True)

    ref = attn_reference(hidden, encoder_outputs, attn_weight, attn_bias,
                         score_weight, seq_mask)

    # Exact-semantics float32 operand path.
    out_f32 = attn_forward(hidden, encoder_outputs, attn_weight, attn_bias,
                           score_weight, seq_mask, compute_dtype=jnp.float32)
    out_f32 = jax.block_until_ready(out_f32)
    assert out_f32.shape == (B, 1, S)
    assert jnp.allclose(out_f32, ref, atol=1e-4, rtol=1e-4), \
        float(jnp.max(jnp.abs(out_f32 - ref)))

    # Recommended bf16-operand path (f32 accumulate / tanh / softmax), used the
    # way a decode loop would: prepare once, then call attn_step per step.
    params = prepare_attn_params(attn_weight, attn_bias, score_weight)
    enc_p, mask_bias = prepare_encoder(encoder_outputs, seq_mask)
    out_bf16 = jax.block_until_ready(attn_step(hidden, enc_p, mask_bias, params))
    assert out_bf16.shape == (B, 1, S)
    assert jnp.allclose(out_bf16, ref, atol=5e-2), \
        float(jnp.max(jnp.abs(out_bf16 - ref)))

    # No-mask path.
    ref_nm = attn_reference(hidden, encoder_outputs, attn_weight, attn_bias,
                            score_weight, None)
    out_nm = attn_forward(hidden, encoder_outputs, attn_weight, attn_bias,
                          score_weight, None, compute_dtype=jnp.float32)
    assert jnp.allclose(jax.block_until_ready(out_nm), ref_nm,
                        atol=1e-4, rtol=1e-4)

    print("KERNEL_OK")
</pallas_src>

<mosaic_0001>
module attributes {stable_mosaic.version = 11 : i64} {
  func.func @_attn_kernel(%arg0: i32, %arg1: memref<8x128xf32, #tpu.memory_space<vmem>>, %arg2: memref<8x8x128xf32, #tpu.memory_space<vmem>>, %arg3: memref<128x128xf32, #tpu.memory_space<vmem>>, %arg4: memref<128x128xf32, #tpu.memory_space<vmem>>, %arg5: memref<1x128xf32, #tpu.memory_space<vmem>>, %arg6: memref<1x128xf32, #tpu.memory_space<vmem>>, %arg7: memref<8x128xf32, #tpu.memory_space<vmem>>, %arg8: memref<8x128xf32, #tpu.memory_space<vmem>>) attributes {dimension_semantics = [#tpu.dimension_semantics<parallel>], iteration_bounds = array<i64: 1>, scalar_prefetch = 0 : i64, scratch_operands = 0 : i64, tpu.core_type = #tpu.core_type<tc>, window_params = [{transform_indices = @transform_0, window_bounds = array<i64: 8, 128>}, {transform_indices = @transform_1, window_bounds = array<i64: 8, 8, 128>}, {pipeline_mode = #tpu.pipeline_mode<synchronous>, transform_indices = @transform_2, window_bounds = array<i64: 128, 128>}, {pipeline_mode = #tpu.pipeline_mode<synchronous>, transform_indices = @transform_3, window_bounds = array<i64: 128, 128>}, {pipeline_mode = #tpu.pipeline_mode<synchronous>, transform_indices = @transform_4, window_bounds = array<i64: 1, 128>}, {pipeline_mode = #tpu.pipeline_mode<synchronous>, transform_indices = @transform_5, window_bounds = array<i64: 1, 128>}, {transform_indices = @transform_6, window_bounds = array<i64: 8, 128>}, {transform_indices = @transform_7, window_bounds = array<i64: 8, 128>}]} {
    %c0 = arith.constant 0 : index
    %c0_0 = arith.constant 0 : index
    %0 = vector.load %arg1[%c0, %c0_0] : memref<8x128xf32, #tpu.memory_space<vmem>>, vector<8x128xf32>
    %c0_1 = arith.constant 0 : index
    %c0_2 = arith.constant 0 : index
    %c0_3 = arith.constant 0 : index
    %1 = vector.load %arg2[%c0_1, %c0_2, %c0_3] : memref<8x8x128xf32, #tpu.memory_space<vmem>>, vector<8x8x128xf32>
    %c0_4 = arith.constant 0 : index
    %c0_5 = arith.constant 0 : index
    %2 = vector.load %arg3[%c0_4, %c0_5] : memref<128x128xf32, #tpu.memory_space<vmem>>, vector<128x128xf32>
    %cst = arith.constant dense<0.000000e+00> : vector<8x128xf32>
    %3 = tpu.matmul %0, %2, %cst {dimension_numbers = #tpu.dot_dimension_numbers<[1], [0], [0], [1], [0, 0, 1, 1], [], []>} : vector<8x128xf32>, vector<128x128xf32>, vector<8x128xf32> -> vector<8x128xf32>
    %c0_6 = arith.constant 0 : index
    %c0_7 = arith.constant 0 : index
    %4 = vector.load %arg5[%c0_6, %c0_7] : memref<1x128xf32, #tpu.memory_space<vmem>>, vector<1x128xf32>
    %5 = vector.broadcast %4 : vector<1x128xf32> to vector<8x128xf32>
    %6 = arith.addf %3, %5 : vector<8x128xf32>
    %7 = vector.shape_cast %1 : vector<8x8x128xf32> to vector<64x128xf32>
    %c0_8 = arith.constant 0 : index
    %c0_9 = arith.constant 0 : index
    %8 = vector.load %arg4[%c0_8, %c0_9] : memref<128x128xf32, #tpu.memory_space<vmem>>, vector<128x128xf32>
    %cst_10 = arith.constant dense<0.000000e+00> : vector<64x128xf32>
    %9 = tpu.matmul %7, %8, %cst_10 {dimension_numbers = #tpu.dot_dimension_numbers<[1], [0], [0], [1], [0, 0, 1, 1], [], []>} : vector<64x128xf32>, vector<128x128xf32>, vector<64x128xf32> -> vector<64x128xf32>
    %10 = vector.shape_cast %9 : vector<64x128xf32> to vector<8x8x128xf32>
    %11 = vector.shape_cast %6 : vector<8x128xf32> to vector<1x8x128xf32>
    %12 = vector.broadcast %11 : vector<1x8x128xf32> to vector<8x8x128xf32>
    %13 = arith.addf %10, %12 : vector<8x8x128xf32>
    %14 = math.tanh %13 : vector<8x8x128xf32>
    %c0_11 = arith.constant 0 : index
    %c0_12 = arith.constant 0 : index
    %15 = vector.load %arg6[%c0_11, %c0_12] : memref<1x128xf32, #tpu.memory_space<vmem>>, vector<1x128xf32>
    %16 = vector.shape_cast %15 : vector<1x128xf32> to vector<1x1x128xf32>
    %17 = vector.broadcast %16 : vector<1x1x128xf32> to vector<8x8x128xf32>
    %18 = arith.mulf %14, %17 : vector<8x8x128xf32>
    %cst_13 = arith.constant dense<0.000000e+00> : vector<8x8xf32>
    %19 = vector.multi_reduction <add>, %18, %cst_13 [2] : vector<8x8x128xf32> to vector<8x8xf32>
    %20 = tpu.transpose %19, [1, 0] : vector<8x8xf32> -> vector<8x8xf32>
    %cst_14 = arith.constant 0.000000e+00 : f32
    %21 = vector.broadcast %cst_14 : f32 to vector<8x120xf32>
    %22 = tpu.concatenate %20, %21 in 1 : vector<8x8xf32>, vector<8x120xf32> -> vector<8x128xf32>
    %c0_15 = arith.constant 0 : index
    %c0_16 = arith.constant 0 : index
    %23 = vector.load %arg7[%c0_15, %c0_16] : memref<8x128xf32, #tpu.memory_space<vmem>>, vector<8x128xf32>
    %cst_17 = arith.constant -1.000000e+00 : f32
    %24 = vector.broadcast %cst_17 : f32 to vector<8x128xf32>
    %25 = arith.cmpf olt, %23, %24 : vector<8x128xf32>
    %26 = arith.select %25, %23, %22 : vector<8x128xi1>, vector<8x128xf32>
    %cst_18 = arith.constant dense<0xFF800000> : vector<8xf32>
    %27 = vector.multi_reduction <maximumf>, %26, %cst_18 [1] : vector<8x128xf32> to vector<8xf32>
    %28 = vector.shape_cast %27 : vector<8xf32> to vector<8x1xf32>
    %29 = vector.broadcast %28 : vector<8x1xf32> to vector<8x128xf32>
    %30 = arith.subf %26, %29 : vector<8x128xf32>
    %31 = math.exp %30 : vector<8x128xf32>
    %cst_19 = arith.constant dense<0.000000e+00> : vector<8xf32>
    %32 = vector.multi_reduction <add>, %31, %cst_19 [1] : vector<8x128xf32> to vector<8xf32>
    %33 = vector.shape_cast %32 : vector<8xf32> to vector<8x1xf32>
    %34 = tpu.reciprocal %33 {approx = true} : vector<8x1xf32> -> vector<8x1xf32>
    %35 = arith.mulf %33, %34 : vector<8x1xf32>
    %cst_20 = arith.constant 2.000000e+00 : f32
    %36 = vector.broadcast %cst_20 : f32 to vector<8x1xf32>
    %37 = arith.subf %36, %35 : vector<8x1xf32>
    %38 = arith.mulf %34, %37 : vector<8x1xf32>
    %39 = vector.broadcast %38 : vector<8x1xf32> to vector<8x128xf32>
    %40 = arith.mulf %31, %39 : vector<8x128xf32>
    %c0_21 = arith.constant 0 : index
    %c0_22 = arith.constant 0 : index
    %41 = vector.load %arg8[%c0_21, %c0_22] : memref<8x128xf32, #tpu.memory_space<vmem>>, vector<8x128xf32>
    tpu.vector_store %arg8[%c0_21, %c0_22], %40 {strides = array<i32>} : memref<8x128xf32, #tpu.memory_space<vmem>>, vector<8x128xf32>,
    return
  }
  func.func @transform_0(%arg0: i32) -> (i32, i32) {
    %c0_i32 = arith.constant 0 : i32
    %c0_i32_0 = arith.constant 0 : i32
    return %arg0, %c0_i32 : i32, i32
  }
  func.func @transform_1(%arg0: i32) -> (i32, i32, i32) {
    %c0_i32 = arith.constant 0 : i32
    %c0_i32_0 = arith.constant 0 : i32
    %c0_i32_1 = arith.constant 0 : i32
    return %c0_i32, %arg0, %c0_i32_0 : i32, i32, i32
  }
  func.func @transform_2(%arg0: i32) -> (i32, i32) {
    %c0_i32 = arith.constant 0 : i32
    %c0_i32_0 = arith.constant 0 : i32
    %c0_i32_1 = arith.constant 0 : i32
    return %c0_i32, %c0_i32_0 : i32, i32
  }
  func.func @transform_3(%arg0: i32) -> (i32, i32) {
    %c0_i32 = arith.constant 0 : i32
    %c0_i32_0 = arith.constant 0 : i32
    %c0_i32_1 = arith.constant 0 : i32
    return %c0_i32, %c0_i32_0 : i32, i32
  }
  func.func @transform_4(%arg0: i32) -> (i32, i32) {
    %c0_i32 = arith.constant 0 : i32
    %c0_i32_0 = arith.constant 0 : i32
    %c0_i32_1 = arith.constant 0 : i32
    return %c0_i32, %c0_i32_0 : i32, i32
  }
  func.func @transform_5(%arg0: i32) -> (i32, i32) {
    %c0_i32 = arith.constant 0 : i32
    %c0_i32_0 = arith.constant 0 : i32
    %c0_i32_1 = arith.constant 0 : i32
    return %c0_i32, %c0_i32_0 : i32, i32
  }
  func.func @transform_6(%arg0: i32) -> (i32, i32) {
    %c0_i32 = arith.constant 0 : i32
    %c0_i32_0 = arith.constant 0 : i32
    return %arg0, %c0_i32 : i32, i32
  }
  func.func @transform_7(%arg0: i32) -> (i32, i32) {
    %c0_i32 = arith.constant 0 : i32
    %c0_i32_0 = arith.constant 0 : i32
    return %arg0, %c0_i32 : i32, i32
  }
}

</mosaic_0001>

<llo_original>
// kernel: tpu_custom_call.1
$region0: #{tpu_custom_call.1}
  #allocation0 [shape = 'u32[]', space=smem, size = 0x4, offset = 0x4, fixed_abs, tag = 'smem constant byte address 0x4 - core index']
  #allocation1 [shape = 'u32[144,128]{1,0:T(1,128)}', space=vmem, size = 0x12000, scoped, tag = 'internal scratch']
  %s0 = inlined_call_operand.hbm [shape: f32[8,128], index: 0, kind: input, shape index: {}]
  %s1 = inlined_call_operand.hbm [shape: f32[8,8,128], index: 1, kind: input, shape index: {}]
  %s2 = inlined_call_operand.hbm [shape: f32[128,128], index: 2, kind: input, shape index: {}]
  %s3 = inlined_call_operand.hbm [shape: f32[128,128], index: 3, kind: input, shape index: {}]
  %s4 = inlined_call_operand.vmem [shape: f32[1,128], index: 4, kind: input, shape index: {}]
  %s5 = inlined_call_operand.vmem [shape: f32[1,128], index: 5, kind: input, shape index: {}]
  %s6 = inlined_call_operand.vmem [shape: f32[8,128], index: 6, kind: input, shape index: {}]
  %s7 = inlined_call_operand.hbm [shape: f32[8,128], index: 7, kind: output, shape index: {}]
  %s8 = sld [smem:[#allocation0]]
  $region54: #{tpu_custom_call.1} parent=0
    _
  %s10 = ssub.s32 1, %s8
  %s11 = scalar_select 0, %s10, %s8
  $region1: #{tpu_custom_call.1} parent=0
    #allocation2 [shape = 'u8[4096]{0}', space=vmem, size = 0x1000, scoped, tag = 'input window, operand 0, single buffered']
    #allocation3 [shape = 's32[1]{0}', space=sflag, size = 0x4, scoped, tag = 'scoped memory for tpu_custom_call.1']
    #allocation4 [shape = 's32[1]{0}', space=sflag, size = 0x4, scoped, tag = 'scoped memory for tpu_custom_call.1']
    #allocation5 [shape = 'u8[32768]{0}', space=vmem, size = 0x8000, scoped, tag = 'input window, operand 1, single buffered']
    #allocation6 [shape = 's32[1]{0}', space=sflag, size = 0x4, scoped, tag = 'scoped memory for tpu_custom_call.1']
    #allocation7 [shape = 'u8[65536]{0}', space=vmem, size = 0x10000, scoped, tag = 'input window, operand 2, single buffered']
    #allocation8 [shape = 'u8[65536]{0}', space=vmem, size = 0x10000, scoped, tag = 'input window, operand 3, single buffered']
    #allocation9 [shape = 's32[1]{0}', space=sflag, size = 0x4, scoped, tag = 'scoped memory for tpu_custom_call.1']
    #allocation10 [shape = 'u8[4096]{0}', space=vmem, size = 0x1000, scoped, tag = 'output window, operand 0, single buffered']
    %12 = vsyncpa [#allocation3], 0
    %13 = vsyncpa [#allocation6], 0
    %14 = vsyncpa [#allocation9], 0
    %15 = vsyncpa [#allocation4], 0
    // Predicated region
    $region2: #{tpu_custom_call.1} parent=1 // pred_check
      _
    $region3: #{tpu_custom_call.1} parent=1 // pred_check_branch
      %17 = sbr.rel (0) target = $region5
    $region4: #{tpu_custom_call.1} parent=1 // pred_region
      %s19 = ssub.s32 128, 128
      %20 = vsyncadd [#allocation3], %s19
      %s22 = sshll.u32 [#allocation2], 4
      %s23 = int_to_ptr.vmem [resolvable:$true] %s22
      %25 = dma.hbm_to_vmem [thread:$0]  %s0, 128, %s23, [#allocation3]
    $region5: #{tpu_custom_call.1} parent=1 // pred_fallthru
      _
    // Predicated region
    $region6: #{tpu_custom_call.1} parent=1 // pred_check
      _
    $region7: #{tpu_custom_call.1} parent=1 // pred_check_branch
      %27 = sbr.rel (0) target = $region9
    $region8: #{tpu_custom_call.1} parent=1 // pred_region
      %s29 = ssub.s32 1024, 1024
      %30 = vsyncadd [#allocation6], %s29
      %s31 = sshll.u32 [#allocation5], 4
      %s32 = int_to_ptr.vmem [resolvable:$true] %s31
      %37 = dma.hbm_to_vmem [thread:$0]  %s1, 1024, %s32, [#allocation6], 128, 128, 8
    $region9: #{tpu_custom_call.1} parent=1 // pred_fallthru
      _
    // Predicated region
    $region10: #{tpu_custom_call.1} parent=1 // pred_check
      _
    $region11: #{tpu_custom_call.1} parent=1 // pred_check_branch
      %39 = sbr.rel (0) target = $region13
    $region12: #{tpu_custom_call.1} parent=1 // pred_region
      %s41 = ssub.s32 2048, 2048
      %42 = vsyncadd [#allocation6], %s41
      %s43 = sshll.u32 [#allocation7], 4
      %s44 = int_to_ptr.vmem [resolvable:$true] %s43
      %49 = dma.hbm_to_vmem [thread:$0]  %s2, 2048, %s44, [#allocation6], 128, 128, 8
    $region13: #{tpu_custom_call.1} parent=1 // pred_fallthru
      _
    // Predicated region
    $region14: #{tpu_custom_call.1} parent=1 // pred_check
      _
    $region15: #{tpu_custom_call.1} parent=1 // pred_check_branch
      %51 = sbr.rel (0) target = $region17
    $region16: #{tpu_custom_call.1} parent=1 // pred_region
      %s53 = ssub.s32 2048, 2048
      %54 = vsyncadd [#allocation9], %s53
      %s55 = sshll.u32 [#allocation8], 4
      %s56 = int_to_ptr.vmem [resolvable:$true] %s55
      %61 = dma.hbm_to_vmem [thread:$0]  %s3, 2048, %s56, [#allocation9], 128, 128, 8
    $region17: #{tpu_custom_call.1} parent=1 // pred_fallthru
      _
    // Predicated region
    $region18: #{tpu_custom_call.1} parent=1 // pred_check
      _
    $region19: #{tpu_custom_call.1} parent=1 // pred_check_branch
      %63 = sbr.rel (0) target = $region21
    $region20: #{tpu_custom_call.1} parent=1 // pred_region
      _
    $region21: #{tpu_custom_call.1} parent=1 // pred_fallthru
      _
    // Predicated region
    $region22: #{tpu_custom_call.1} parent=1 // pred_check
      _
    $region23: #{tpu_custom_call.1} parent=1 // pred_check_branch
      %65 = sbr.rel (0) target = $region25
    $region24: #{tpu_custom_call.1} parent=1 // pred_region
      _
    $region25: #{tpu_custom_call.1} parent=1 // pred_fallthru
      _
    // Predicated region
    $region26: #{tpu_custom_call.1} parent=1 // pred_check
      _
    $region27: #{tpu_custom_call.1} parent=1 // pred_check_branch
      %67 = sbr.rel (0) target = $region29
    $region28: #{tpu_custom_call.1} parent=1 // pred_region
      _
    $region29: #{tpu_custom_call.1} parent=1 // pred_fallthru
      _
    // Predicated region
    $region30: #{tpu_custom_call.1} parent=1 // pred_check
      _
    $region31: #{tpu_custom_call.1} parent=1 // pred_check_branch
      %69 = sbr.rel (0) target = $region33
    $region32: #{tpu_custom_call.1} parent=1 // pred_region
      %70 = dma.done [#allocation3], 128
    $region33: #{tpu_custom_call.1} parent=1 // pred_fallthru
      _
    // Predicated region
    $region34: #{tpu_custom_call.1} parent=1 // pred_check
      _
    $region35: #{tpu_custom_call.1} parent=1 // pred_check_branch
      %72 = sbr.rel (0) target = $region37
    $region36: #{tpu_custom_call.1} parent=1 // pred_region
      %73 = dma.done [#allocation6], 1024
    $region37: #{tpu_custom_call.1} parent=1 // pred_fallthru
      _
    // Predicated region
    $region38: #{tpu_custom_call.1} parent=1 // pred_check
      _
    $region39: #{tpu_custom_call.1} parent=1 // pred_check_branch
      %75 = sbr.rel (0) target = $region41
    $region40: #{tpu_custom_call.1} parent=1 // pred_region
      %76 = dma.done [#allocation6], 2048
    $region41: #{tpu_custom_call.1} parent=1 // pred_fallthru
      _
    // Predicated region
    $region42: #{tpu_custom_call.1} parent=1 // pred_check
      _
    $region43: #{tpu_custom_call.1} parent=1 // pred_check_branch
      %78 = sbr.rel (0) target = $region45
    $region44: #{tpu_custom_call.1} parent=1 // pred_region
      %79 = dma.done [#allocation9], 2048
    $region45: #{tpu_custom_call.1} parent=1 // pred_fallthru
      _
    %v80 = vld [vmem:[#allocation2] sm:$0xff]
    %v81 = vld [vmem:[#allocation5] sm:$0xff]
    %v82 = vld [vmem:[#allocation5 + $0x8] sm:$0xff]
    %v83 = vld [vmem:[#allocation5 + $0x10] sm:$0xff]
    %v84 = vld [vmem:[#allocation5 + $0x18] sm:$0xff]
    %v85 = vld [vmem:[#allocation5 + $0x20] sm:$0xff]
    %v86 = vld [vmem:[#allocation5 + $0x28] sm:$0xff]
    %v87 = vld [vmem:[#allocation5 + $0x30] sm:$0xff]
    %v88 = vld [vmem:[#allocation5 + $0x38] sm:$0xff]
    %v89 = vld [vmem:[#allocation7] sm:$0xff]
    %v90 = vld [vmem:[#allocation7 + $0x8] sm:$0xff]
    %v91 = vld [vmem:[#allocation7 + $0x10] sm:$0xff]
    %v92 = vld [vmem:[#allocation7 + $0x18] sm:$0xff]
    %v93 = vld [vmem:[#allocation7 + $0x20] sm:$0xff]
    %v94 = vld [vmem:[#allocation7 + $0x28] sm:$0xff]
    %v95 = vld [vmem:[#allocation7 + $0x30] sm:$0xff]
    %v96 = vld [vmem:[#allocation7 + $0x38] sm:$0xff]
    %v97 = vld [vmem:[#allocation7 + $0x40] sm:$0xff]
    %v98 = vld [vmem:[#allocation7 + $0x48] sm:$0xff]
    %v99 = vld [vmem:[#allocation7 + $0x50] sm:$0xff]
    %v100 = vld [vmem:[#allocation7 + $0x58] sm:$0xff]
    %v101 = vld [vmem:[#allocation7 + $0x60] sm:$0xff]
    %v102 = vld [vmem:[#allocation7 + $0x68] sm:$0xff]
    %v103 = vld [vmem:[#allocation7 + $0x70] sm:$0xff]
    %v104 = vld [vmem:[#allocation7 + $0x78] sm:$0xff]
    %v105 = vld [vmem:[%s4] sm:$0x1]
    %v107 = vlaneseq
    %v108 = vshrl.u32 %v107, 7
    %v109 = vsub.s32 0, %v108
    %v110 = vrot.slane %v105, %v109
    %112 = vmatprep.subr.mxu0 0.0
    %113 = vmatpush1.msra.mxu0 %v89
    %114 = vmatprep.subr.mxu0 0.0
    %115 = vmatpush1.msra.mxu0 %v90
    %116 = vmatprep.subr.mxu0 0.0
    %117 = vmatpush1.msra.mxu0 %v91
    %118 = vmatprep.subr.mxu0 0.0
    %119 = vmatpush1.msra.mxu0 %v92
    %120 = vmatprep.subr.mxu0 0.0
    %121 = vmatpush1.msra.mxu0 %v93
    %122 = vmatprep.subr.mxu0 0.0
    %123 = vmatpush1.msra.mxu0 %v94
    %124 = vmatprep.subr.mxu0 0.0
    %125 = vmatpush1.msra.mxu0 %v95
    %126 = vmatprep.subr.mxu0 0.0
    %127 = vmatpush1.msra.mxu0 %v96
    %128 = vmatprep.subr.mxu0 0.0
    %129 = vmatpush1.msra.mxu0 %v97
    %130 = vmatprep.subr.mxu0 0.0
    %131 = vmatpush1.msra.mxu0 %v98
    %132 = vmatprep.subr.mxu0 0.0
    %133 = vmatpush1.msra.mxu0 %v99
    %134 = vmatprep.subr.mxu0 0.0
    %135 = vmatpush1.msra.mxu0 %v100
    %136 = vmatprep.subr.mxu0 0.0
    %137 = vmatpush1.msra.mxu0 %v101
    %138 = vmatprep.subr.mxu0 0.0
    %139 = vmatpush1.msra.mxu0 %v102
    %140 = vmatprep.subr.mxu0 0.0
    %141 = vmatpush1.msra.mxu0 %v103
    %142 = vmatprep.subr.mxu0 0.0
    %143 = vmatpush1.msra.mxu0 %v104
    %144 = vmatprep.subr.mxu0 0.0
    %145 = vmatpush1.msra.mxu0 0.0
    %146 = vmatprep.subr.mxu0 0.0
    %147 = vmatpush1.msra.mxu0 0.0
    %148 = vmatprep.subr.mxu0 0.0
    %149 = vmatpush1.msra.mxu0 0.0
    %150 = vmatprep.subr.mxu0 0.0
    %151 = vmatpush1.msra.mxu0 0.0
    %152 = vmatprep.subr.mxu0 0.0
    %153 = vmatpush1.msra.mxu0 0.0
    %154 = vmatprep.subr.mxu0 0.0
    %155 = vmatpush1.msra.mxu0 0.0
    %156 = vmatprep.subr.mxu0 0.0
    %157 = vmatpush1.msra.mxu0 0.0
    %158 = vmatprep.subr.mxu0 0.0
    %159 = vmatpush1.msra.mxu0 0.0
    %160 = vmatprep.subr.mxu0 0.0
    %161 = vmatpush1.msra.mxu0 0.0
    %162 = vmatprep.subr.mxu0 0.0
    %163 = vmatpush1.msra.mxu0 0.0
    %164 = vmatprep.subr.mxu0 0.0
    %165 = vmatpush1.msra.mxu0 0.0
    %166 = vmatprep.subr.mxu0 0.0
    %167 = vmatpush1.msra.mxu0 0.0
    %168 = vmatprep.subr.mxu0 0.0
    %169 = vmatpush1.msra.mxu0 0.0
    %170 = vmatprep.subr.mxu0 0.0
    %171 = vmatpush1.msra.mxu0 0.0
    %172 = vmatprep.subr.mxu0 0.0
    %173 = vmatpush1.msra.mxu0 0.0
    %174 = vmatprep.subr.mxu0 0.0
    %175 = vmatpush1.msra.mxu0 0.0
    %176 = vmatprep.mubr.f32.mxu0 0.0
    %177 = vmatmul.mubr.f32.gmra.mrb[0].mxu0 %v80
    %v178 = vpop.f32.mrb[0].mxu0
    %v179 = vadd.f32 %v110, %v178
    %v180 = vpop.f32.mrb[0].mxu0
    %181 = vdwg.mxu0
    %v182 = vld [vmem:[#allocation8] sm:$0xff]
    %v183 = vld [vmem:[#allocation8 + $0x8] sm:$0xff]
    %v184 = vld [vmem:[#allocation8 + $0x10] sm:$0xff]
    %v185 = vld [vmem:[#allocation8 + $0x18] sm:$0xff]
    %v186 = vld [vmem:[#allocation8 + $0x20] sm:$0xff]
    %v187 = vld [vmem:[#allocation8 + $0x28] sm:$0xff]
    %v188 = vld [vmem:[#allocation8 + $0x30] sm:$0xff]
    %v189 = vld [vmem:[#allocation8 + $0x38] sm:$0xff]
    %v190 = vld [vmem:[#allocation8 + $0x40] sm:$0xff]
    %v191 = vld [vmem:[#allocation8 + $0x48] sm:$0xff]
    %v192 = vld [vmem:[#allocation8 + $0x50] sm:$0xff]
    %v193 = vld [vmem:[#allocation8 + $0x58] sm:$0xff]
    %v194 = vld [vmem:[#allocation8 + $0x60] sm:$0xff]
    %v195 = vld [vmem:[#allocation8 + $0x68] sm:$0xff]
    %v196 = vld [vmem:[#allocation8 + $0x70] sm:$0xff]
    %v197 = vld [vmem:[#allocation8 + $0x78] sm:$0xff]
    %198 = vmatprep.subr.mxu0 0.0
    %199 = vmatpush1.msra.mxu0 %v182
    %200 = vmatprep.subr.mxu0 0.0
    %201 = vmatpush1.msra.mxu0 %v183
    %202 = vmatprep.subr.mxu0 0.0
    %203 = vmatpush1.msra.mxu0 %v184
    %204 = vmatprep.subr.mxu0 0.0
    %205 = vmatpush1.msra.mxu0 %v185
    %206 = vmatprep.subr.mxu0 0.0
    %207 = vmatpush1.msra.mxu0 %v186
    %208 = vmatprep.subr.mxu0 0.0
    %209 = vmatpush1.msra.mxu0 %v187
    %210 = vmatprep.subr.mxu0 0.0
    %211 = vmatpush1.msra.mxu0 %v188
    %212 = vmatprep.subr.mxu0 0.0
    %213 = vmatpush1.msra.mxu0 %v189
    %214 = vmatprep.subr.mxu0 0.0
    %215 = vmatpush1.msra.mxu0 %v190
    %216 = vmatprep.subr.mxu0 0.0
    %217 = vmatpush1.msra.mxu0 %v191
    %218 = vmatprep.subr.mxu0 0.0
    %219 = vmatpush1.msra.mxu0 %v192
    %220 = vmatprep.subr.mxu0 0.0
    %221 = vmatpush1.msra.mxu0 %v193
    %222 = vmatprep.subr.mxu0 0.0
    %223 = vmatpush1.msra.mxu0 %v194
    %224 = vmatprep.subr.mxu0 0.0
    %225 = vmatpush1.msra.mxu0 %v195
    %226 = vmatprep.subr.mxu0 0.0
    %227 = vmatpush1.msra.mxu0 %v196
    %228 = vmatprep.subr.mxu0 0.0
    %229 = vmatpush1.msra.mxu0 %v197
    %230 = vmatprep.subr.mxu0 0.0
    %231 = vmatpush1.msra.mxu0 0.0
    %232 = vmatprep.subr.mxu0 0.0
    %233 = vmatpush1.msra.mxu0 0.0
    %234 = vmatprep.subr.mxu0 0.0
    %235 = vmatpush1.msra.mxu0 0.0
    %236 = vmatprep.subr.mxu0 0.0
    %237 = vmatpush1.msra.mxu0 0.0
    %238 = vmatprep.subr.mxu0 0.0
    %239 = vmatpush1.msra.mxu0 0.0
    %240 = vmatprep.subr.mxu0 0.0
    %241 = vmatpush1.msra.mxu0 0.0
    %242 = vmatprep.subr.mxu0 0.0
    %243 = vmatpush1.msra.mxu0 0.0
    %244 = vmatprep.subr.mxu0 0.0
    %245 = vmatpush1.msra.mxu0 0.0
    %246 = vmatprep.subr.mxu0 0.0
    %247 = vmatpush1.msra.mxu0 0.0
    %248 = vmatprep.subr.mxu0 0.0
    %249 = vmatpush1.msra.mxu0 0.0
    %250 = vmatprep.subr.mxu0 0.0
    %251 = vmatpush1.msra.mxu0 0.0
    %252 = vmatprep.subr.mxu0 0.0
    %253 = vmatpush1.msra.mxu0 0.0
    %254 = vmatprep.subr.mxu0 0.0
    %255 = vmatpush1.msra.mxu0 0.0
    %256 = vmatprep.subr.mxu0 0.0
    %257 = vmatpush1.msra.mxu0 0.0
    %258 = vmatprep.subr.mxu0 0.0
    %259 = vmatpush1.msra.mxu0 0.0
    %260 = vmatprep.subr.mxu0 0.0
    %261 = vmatpush1.msra.mxu0 0.0
    %262 = vmatprep.mubr.f32.mxu0 0.0
    %263 = vmatmul.mubr.f32.gmra.mrb[0].mxu0 %v81
    %v264 = vpop.f32.mrb[0].mxu0
    %v265 = vadd.f32 0.0, %v264
    %v266 = vpop.f32.mrb[0].mxu0
    %267 = vmatprep.mubr.f32.mxu0 0.0
    %268 = vmatmul.mubr.f32.gmra.mrb[0].mxu0 %v82
    %v269 = vpop.f32.mrb[0].mxu0
    %v270 = vadd.f32 0.0, %v269
    %v271 = vpop.f32.mrb[0].mxu0
    %272 = vmatprep.mubr.f32.mxu0 0.0
    %273 = vmatmul.mubr.f32.gmra.mrb[0].mxu0 %v83
    %v274 = vpop.f32.mrb[0].mxu0
    %v275 = vadd.f32 0.0, %v274
    %v276 = vpop.f32.mrb[0].mxu0
    %277 = vmatprep.mubr.f32.mxu0 0.0
    %278 = vmatmul.mubr.f32.gmra.mrb[0].mxu0 %v84
    %v279 = vpop.f32.mrb[0].mxu0
    %v280 = vadd.f32 0.0, %v279
    %v281 = vpop.f32.mrb[0].mxu0
    %282 = vmatprep.mubr.f32.mxu0 0.0
    %283 = vmatmul.mubr.f32.gmra.mrb[0].mxu0 %v85
    %v284 = vpop.f32.mrb[0].mxu0
    %v285 = vadd.f32 0.0, %v284
    %v286 = vpop.f32.mrb[0].mxu0
    %287 = vmatprep.mubr.f32.mxu0 0.0
    %288 = vmatmul.mubr.f32.gmra.mrb[0].mxu0 %v86
    %v289 = vpop.f32.mrb[0].mxu0
    %v290 = vadd.f32 0.0, %v289
    %v291 = vpop.f32.mrb[0].mxu0
    %292 = vmatprep.mubr.f32.mxu0 0.0
    %293 = vmatmul.mubr.f32.gmra.mrb[0].mxu0 %v87
    %v294 = vpop.f32.mrb[0].mxu0
    %v295 = vadd.f32 0.0, %v294
    %v296 = vpop.f32.mrb[0].mxu0
    %297 = vmatprep.mubr.f32.mxu0 0.0
    %298 = vmatmul.mubr.f32.gmra.mrb[0].mxu0 %v88
    %v299 = vpop.f32.mrb[0].mxu0
    %v300 = vadd.f32 0.0, %v299
    %v301 = vpop.f32.mrb[0].mxu0
    %302 = vdwg.mxu0
    %v303 = vadd.f32 %v265, %v179
    %v304 = vadd.f32 %v270, %v179
    %v305 = vadd.f32 %v275, %v179
    %v306 = vadd.f32 %v280, %v179
    %v307 = vadd.f32 %v285, %v179
    %v308 = vadd.f32 %v290, %v179
    %v309 = vadd.f32 %v295, %v179
    %v310 = vadd.f32 %v300, %v179
    %v311 = vtanh.pop %v303
    %v312 = vtanh.pop %v304
    %v313 = vtanh.pop %v305
    %v314 = vtanh.pop %v306
    %v315 = vtanh.pop %v307
    %v316 = vtanh.pop %v308
    %v317 = vtanh.pop %v309
    %v318 = vtanh.pop %v310
    %v319 = vld [vmem:[%s5] sm:$0x1]
    %v321 = vlaneseq
    %v322 = vshrl.u32 %v321, 7
    %v323 = vsub.s32 0, %v322
    %v324 = vrot.slane %v319, %v323
    %v326 = vmul.f32 %v311, %v324
    %v327 = vmul.f32 %v312, %v324
    %v328 = vmul.f32 %v313, %v324
    %v329 = vmul.f32 %v314, %v324
    %v330 = vmul.f32 %v315, %v324
    %v331 = vmul.f32 %v316, %v324
    %v332 = vmul.f32 %v317, %v324
    %v333 = vmul.f32 %v318, %v324
    %334 = vadd.xlane.f32.xlu0 %v326
    %v335 = vpop.xlane.xlu0 %334
    %336 = vadd.xlane.f32.xlu0 %v327
    %v337 = vpop.xlane.xlu0 %336
    %338 = vadd.xlane.f32.xlu0 %v328
    %v339 = vpop.xlane.xlu0 %338
    %340 = vadd.xlane.f32.xlu0 %v329
    %v341 = vpop.xlane.xlu0 %340
    %342 = vadd.xlane.f32.xlu0 %v330
    %v343 = vpop.xlane.xlu0 %342
    %344 = vadd.xlane.f32.xlu0 %v331
    %v345 = vpop.xlane.xlu0 %344
    %346 = vadd.xlane.f32.xlu0 %v332
    %v347 = vpop.xlane.xlu0 %346
    %348 = vadd.xlane.f32.xlu0 %v333
    %v349 = vpop.xlane.xlu0 %348
    %v358 = vlaneseq
    %v359 = vand.u32 %v358, 127
    %v360 = vlaneseq
    %v361 = vshrl.u32 %v360, 7
    %v362 = vsub.s32 %v359, %v361
    %v363 = vrot.slane %v335, %v362
    %v364 = vlaneseq
    %v365 = vshrl.u32 %v364, 7
    %v366 = vsub.s32 %v359, %v365
    %v367 = vrot.slane %v337, %v366
    %v368 = vlaneseq
    %v369 = vshrl.u32 %v368, 7
    %v370 = vsub.s32 %v359, %v369
    %v371 = vrot.slane %v339, %v370
    %v372 = vlaneseq
    %v373 = vshrl.u32 %v372, 7
    %v374 = vsub.s32 %v359, %v373
    %v375 = vrot.slane %v341, %v374
    %v376 = vlaneseq
    %v377 = vshrl.u32 %v376, 7
    %v378 = vsub.s32 %v359, %v377
    %v379 = vrot.slane %v343, %v378
    %v380 = vlaneseq
    %v381 = vshrl.u32 %v380, 7
    %v382 = vsub.s32 %v359, %v381
    %v383 = vrot.slane %v345, %v382
    %v384 = vlaneseq
    %v385 = vshrl.u32 %v384, 7
    %v386 = vsub.s32 %v359, %v385
    %v387 = vrot.slane %v347, %v386
    %v388 = vlaneseq
    %v389 = vshrl.u32 %v388, 7
    %v390 = vsub.s32 %v359, %v389
    %v391 = vrot.slane %v349, %v390
    %vm392 = vcmask 1041409
    %v393 = vsel %vm392, %v367, %v363
    %vm394 = vcmask 1042434
    %v395 = vsel %vm394, %v371, %v393
    %vm396 = vcmask 1043459
    %v397 = vsel %vm396, %v375, %v395
    %vm398 = vcmask 1044484
    %v399 = vsel %vm398, %v379, %v397
    %vm400 = vcmask 1045509
    %v401 = vsel %vm400, %v383, %v399
    %vm402 = vcmask 1046534
    %v403 = vsel %vm402, %v387, %v401
    %vm404 = vcmask 1047559
    %v405 = vsel %vm404, %v391, %v403
    %407 = vxpose.xlu0.b32.start [1/16] %v405, 128
    %408 = vxpose.xlu0.b32.cont [2/16] 0.0, 128
    %409 = vxpose.xlu0.b32.cont [3/16] 0.0, 128
    %410 = vxpose.xlu0.b32.cont [4/16] 0.0, 128
    %411 = vxpose.xlu0.b32.cont [5/16] 0.0, 128
    %412 = vxpose.xlu0.b32.cont [6/16] 0.0, 128
    %413 = vxpose.xlu0.b32.cont [7/16] 0.0, 128
    %414 = vxpose.xlu0.b32.cont [8/16] 0.0, 128
    %415 = vxpose.xlu0.b32.cont [9/16] 0.0, 128
    %416 = vxpose.xlu0.b32.cont [10/16] 0.0, 128
    %417 = vxpose.xlu0.b32.cont [11/16] 0.0, 128
    %418 = vxpose.xlu0.b32.cont [12/16] 0.0, 128
    %419 = vxpose.xlu0.b32.cont [13/16] 0.0, 128
    %420 = vxpose.xlu0.b32.cont [14/16] 0.0, 128
    %421 = vxpose.xlu0.b32.cont [15/16] 0.0, 128
    %422 = vxpose.xlu0.b32.end [16/16] 0.0, 128
    %v423 = vpop.trf.xlu0
    %v424 = vpop.trf.xlu0
    %v425 = vpop.trf.xlu0
    %v426 = vpop.trf.xlu0
    %v427 = vpop.trf.xlu0
    %v428 = vpop.trf.xlu0
    %v429 = vpop.trf.xlu0
    %v430 = vpop.trf.xlu0
    %v431 = vpop.trf.xlu0
    %v432 = vpop.trf.xlu0
    %v433 = vpop.trf.xlu0
    %v434 = vpop.trf.xlu0
    %v435 = vpop.trf.xlu0
    %v436 = vpop.trf.xlu0
    %v437 = vpop.trf.xlu0
    %v438 = vpop.trf.xlu0
    %vm439 = vcmask 64512
    %v440 = vsel %vm439, %v423, 0.0
    %v441 = vld [vmem:[%s6] sm:$0xff]
    %vm442 = vcmp.lt.f32.partialorder %v441, -1.0
    %v443 = vsel %vm442, %v441, %v440
    %444 = vmax.xlane.f32.xlu0 %v443
    %v445 = vpop.xlane.xlu0 %444
    %v446 = vsub.f32 %v443, %v445
    %v447 = vmul.f32 %v446, 1.442695
    %v448 = vpow.pop %v447
    %449 = vadd.xlane.f32.xlu0 %v448
    %v450 = vpop.xlane.xlu0 %449
    %v451 = vrcp.pop %v450
    %v452 = vmul.f32 %v450, %v451
    %v453 = vsub.f32 2.0, %v452
    %v454 = vmul.f32 %v451, %v453
    %v455 = vmul.f32 %v448, %v454
    %456 = vst [vmem:[#allocation10] sm:$0xff] %v455
    // Predicated region
    $region46: #{tpu_custom_call.1} parent=1 // pred_check
      _
    $region47: #{tpu_custom_call.1} parent=1 // pred_check_branch
      %458 = sbr.rel (0) target = $region49
    $region48: #{tpu_custom_call.1} parent=1 // pred_region
      %s460 = ssub.s32 128, 128
      %461 = vsyncadd [#allocation4], %s460
      %s463 = sshll.u32 [#allocation10], 4
      %s464 = int_to_ptr.vmem [resolvable:$true] %s463
      %466 = dma.vmem_to_hbm [thread:$0]  %s464, 128, %s7, [#allocation4]
    $region49: #{tpu_custom_call.1} parent=1 // pred_fallthru
      _
    // Predicated region
    $region50: #{tpu_custom_call.1} parent=1 // pred_check
      _
    $region51: #{tpu_custom_call.1} parent=1 // pred_check_branch
      %468 = sbr.rel (0) target = $region53
    $region52: #{tpu_custom_call.1} parent=1 // pred_region
      %469 = dma.done [#allocation4], 128
    $region53: #{tpu_custom_call.1} parent=1 // pred_fallthru
      _
    %470 = vsyncpa [#allocation3], 1
    %471 = vsyncpa [#allocation6], 1
    %472 = vsyncpa [#allocation9], 1
    %473 = vsyncpa [#allocation4], 1

</llo_original>
